<compile_context>
chip_gen: v6e
topology: v6e:2x2x1
jax: 0.10.0
libtpu: 0.0.40
codegen_flags: <defaults>
</compile_context>

<pallas_src>
import functools

import jax
import jax.numpy as jnp
from jax.experimental import pallas as pl
from jax.experimental.pallas import tpu as pltpu


def _label_smoothing_kernel(x_ref, t_ref, part_ref, *, confidence, smoothing,
                            n_total, tile_n):
    i = pl.program_id(0)

    x = x_ref[...].astype(jnp.float32)              # (TN, C) f32 compute
    t = t_ref[...]                                  # (TN, 1) int32
    c = x.shape[-1]

    # Folded log_softmax pieces -- never materialize the (TN, C) logprobs.
    m = jnp.max(x, axis=-1, keepdims=True)                              # (TN,1)
    lse = jnp.log(jnp.sum(jnp.exp(x - m), axis=-1, keepdims=True))      # (TN,1)

    # Gather x at the target class via a one-hot lane mask on x (not logprobs).
    col = jax.lax.broadcasted_iota(jnp.int32, x.shape, 1)
    x_t = jnp.sum(jnp.where(col == t, x, 0.0), axis=-1, keepdims=True)  # (TN,1)
    sum_x = jnp.sum(x, axis=-1, keepdims=True)                          # (TN,1)

    # confidence*nll + smoothing*smooth
    #   = (m + lse) - confidence * x_t - (smoothing / C) * sum_x
    loss = (m + lse) - confidence * x_t - (smoothing / c) * sum_x       # (TN,1)

    # Mask padded tail rows (keeps everything lane/sublane shaped).
    row = i * tile_n + jax.lax.broadcasted_iota(jnp.int32, (tile_n, 1), 0)
    loss = jnp.where(row < n_total, loss, 0.0)

    # One scalar partial per tile -> independent output block per grid step.
    part_ref[0, 0] = jnp.sum(loss)


def _pick_tile_n(n, c, in_itemsize, vmem_budget_bytes=16 * 1024 * 1024):
    """Largest multiple-of-8 batch tile that fits a conservative VMEM budget.

    Budget covers ~2 pipelined input buffers (input dtype) plus ~2 full-tile
    f32 temporaries (cast + exp), so it stays within the 32 MiB scoped VMEM
    limit we request (safe on v5e/v6e/v7x).
    """
    per_row = c * (2 * in_itemsize + 2 * 4) + 16
    t = max(8, vmem_budget_bytes // max(per_row, 1))
    t = min(t, 1024)                  # >=512-row tiles already ~85% of roofline
    t = max(8, (t // 8) * 8)
    n8 = max(8, -(-n // 8) * 8)       # never bigger than the (padded) batch
    return min(t, n8)


def label_smoothing_loss(x, target, *, smoothing=0.1, tile_n=None):
    """x: (N, C) float logits, target: (N,) int labels -> scalar f32 loss."""
    n, c = x.shape
    confidence = 1.0 - smoothing
    if tile_n is None:
        tile_n = _pick_tile_n(n, c, x.dtype.itemsize)

    num_tiles = -(-n // tile_n)
    n_pad = num_tiles * tile_n

    t2d = target.astype(jnp.int32).reshape(n, 1)
    if n_pad != n:
        # Pad with well-defined values; padded rows are masked in-kernel.
        x = jnp.pad(x, ((0, n_pad - n), (0, 0)))
        t2d = jnp.pad(t2d, ((0, n_pad - n), (0, 0)))

    kernel = functools.partial(
        _label_smoothing_kernel,
        confidence=confidence,
        smoothing=smoothing,
        n_total=n,
        tile_n=tile_n,
    )

    partials = pl.pallas_call(
        kernel,
        out_shape=jax.ShapeDtypeStruct((num_tiles, 1), jnp.float32),
        grid_spec=pltpu.PrefetchScalarGridSpec(
            num_scalar_prefetch=0,
            grid=(num_tiles,),
            in_specs=[
                pl.BlockSpec((tile_n, c), lambda i: (i, 0)),
                pl.BlockSpec((tile_n, 1), lambda i: (i, 0)),
            ],
            out_specs=pl.BlockSpec(
                (1, 1), lambda i: (i, 0), memory_space=pltpu.SMEM
            ),
        ),
        compiler_params=pltpu.CompilerParams(
            # Independent per-tile partials => batch axis can be parallel
            # (lets Mosaic shard across both TensorCores on v7x).
            dimension_semantics=("parallel",),
            vmem_limit_bytes=32 * 1024 * 1024,
        ),
    )(x, t2d)

    # Final reduction over a tiny vector of per-tile f32 partials in plain JAX
    # (better numerics than a serial scalar accumulator for huge N).
    return jnp.sum(partials) / jnp.float32(n)


def _ref_loss(x, target, smoothing):
    logprobs = jax.nn.log_softmax(x.astype(jnp.float32), axis=-1)
    nll = -jnp.take_along_axis(logprobs, target[:, None], axis=-1)[:, 0]
    smooth = -jnp.mean(logprobs, axis=-1)
    return jnp.mean((1.0 - smoothing) * nll + smoothing * smooth)


if __name__ == "__main__":
    # LabelSmoothing has no learnable parameters; only the smoothing hyperparam.
    key = jax.random.PRNGKey(0)

    # Case 1: small, tile-aligned batch.
    N, C = 16, 128
    kx, kt, key = jax.random.split(key, 3)
    x = jax.random.normal(kx, (N, C), dtype=jnp.float32)
    target = jax.random.randint(kt, (N,), 0, C, dtype=jnp.int32)
    loss = jax.block_until_ready(label_smoothing_loss(x, target, smoothing=0.1))
    ref = _ref_loss(x, target, 0.1)
    assert jnp.allclose(loss, ref, rtol=1e-5, atol=1e-5), (loss, ref)

    # Case 2: ragged batch (exercises padding + in-kernel row mask).
    N2, C2 = 10, 64
    kx2, kt2 = jax.random.split(key)
    x2 = jax.random.normal(kx2, (N2, C2), dtype=jnp.float32)
    target2 = jax.random.randint(kt2, (N2,), 0, C2, dtype=jnp.int32)
    loss2 = jax.block_until_ready(
        label_smoothing_loss(x2, target2, smoothing=0.1))
    ref2 = _ref_loss(x2, target2, 0.1)
    assert jnp.allclose(loss2, ref2, rtol=1e-5, atol=1e-5), (loss2, ref2)

    print("KERNEL_OK")
</pallas_src>

<mosaic_0001>
module attributes {stable_mosaic.version = 11 : i64} {
  func.func @_label_smoothing_kernel(%arg0: i32, %arg1: memref<16x128xf32, #tpu.memory_space<vmem>>, %arg2: memref<16x1xi32, #tpu.memory_space<vmem>>, %arg3: memref<1x1xf32, #tpu.memory_space<smem>>) attributes {dimension_semantics = [#tpu.dimension_semantics<parallel>], iteration_bounds = array<i64: 1>, scalar_prefetch = 0 : i64, scratch_operands = 0 : i64, tpu.core_type = #tpu.core_type<tc>, window_params = [{transform_indices = @transform_0, window_bounds = array<i64: 16, 128>}, {transform_indices = @transform_1, window_bounds = array<i64: 16, 1>}, {transform_indices = @transform_2, window_bounds = array<i64: 1, 1>}]} {
    %c0 = arith.constant 0 : index
    %c0_0 = arith.constant 0 : index
    %0 = vector.load %arg1[%c0, %c0_0] : memref<16x128xf32, #tpu.memory_space<vmem>>, vector<16x128xf32>
    %c0_1 = arith.constant 0 : index
    %c0_2 = arith.constant 0 : index
    %1 = vector.load %arg2[%c0_1, %c0_2] : memref<16x1xi32, #tpu.memory_space<vmem>>, vector<16x1xi32>
    %cst = arith.constant dense<0xFF800000> : vector<16xf32>
    %2 = vector.multi_reduction <maximumf>, %0, %cst [1] : vector<16x128xf32> to vector<16xf32>
    %3 = vector.shape_cast %2 : vector<16xf32> to vector<16x1xf32>
    %4 = vector.broadcast %3 : vector<16x1xf32> to vector<16x128xf32>
    %5 = arith.subf %0, %4 : vector<16x128xf32>
    %6 = math.exp %5 : vector<16x128xf32>
    %cst_3 = arith.constant dense<0.000000e+00> : vector<16xf32>
    %7 = vector.multi_reduction <add>, %6, %cst_3 [1] : vector<16x128xf32> to vector<16xf32>
    %8 = vector.shape_cast %7 : vector<16xf32> to vector<16x1xf32>
    %9 = math.log %8 : vector<16x1xf32>
    %10 = tpu.iota {dimensions = array<i32: 1>} : vector<16x128xi32>
    %11 = vector.broadcast %1 : vector<16x1xi32> to vector<16x128xi32>
    %12 = arith.cmpi eq, %10, %11 : vector<16x128xi32>
    %cst_4 = arith.constant 0.000000e+00 : f32
    %13 = vector.broadcast %cst_4 : f32 to vector<16x128xf32>
    %14 = arith.select %12, %0, %13 : vector<16x128xi1>, vector<16x128xf32>
    %cst_5 = arith.constant dense<0.000000e+00> : vector<16xf32>
    %15 = vector.multi_reduction <add>, %14, %cst_5 [1] : vector<16x128xf32> to vector<16xf32>
    %16 = vector.shape_cast %15 : vector<16xf32> to vector<16x1xf32>
    %cst_6 = arith.constant dense<0.000000e+00> : vector<16xf32>
    %17 = vector.multi_reduction <add>, %0, %cst_6 [1] : vector<16x128xf32> to vector<16xf32>
    %18 = vector.shape_cast %17 : vector<16xf32> to vector<16x1xf32>
    %19 = arith.addf %3, %9 : vector<16x1xf32>
    %cst_7 = arith.constant 0.899999976 : f32
    %20 = vector.broadcast %cst_7 : f32 to vector<16x1xf32>
    %21 = arith.mulf %20, %16 : vector<16x1xf32>
    %22 = arith.subf %19, %21 : vector<16x1xf32>
    %cst_8 = arith.constant 7.812500e-04 : f32
    %23 = vector.broadcast %cst_8 : f32 to vector<16x1xf32>
    %24 = arith.mulf %23, %18 : vector<16x1xf32>
    %25 = arith.subf %22, %24 : vector<16x1xf32>
    %c16_i32 = arith.constant 16 : i32
    %26 = arith.muli %arg0, %c16_i32 : i32
    %27 = tpu.iota {dimensions = array<i32: 0>} : vector<16x1xi32>
    %28 = vector.broadcast %26 : i32 to vector<16x1xi32>
    %29 = arith.addi %28, %27 : vector<16x1xi32>
    %c16_i32_9 = arith.constant 16 : i32
    %30 = vector.broadcast %c16_i32_9 : i32 to vector<16x1xi32>
    %31 = arith.cmpi slt, %29, %30 : vector<16x1xi32>
    %cst_10 = arith.constant 0.000000e+00 : f32
    %32 = vector.broadcast %cst_10 : f32 to vector<16x1xf32>
    %33 = arith.select %31, %25, %32 : vector<16x1xi1>, vector<16x1xf32>
    %34 = vector.shape_cast %33 : vector<16x1xf32> to vector<1x16x1xf32>
    %cst_11 = arith.constant dense<0.000000e+00> : vector<1xf32>
    %35 = vector.multi_reduction <add>, %34, %cst_11 [1, 2] : vector<1x16x1xf32> to vector<1xf32>
    %36 = vector.shape_cast %35 : vector<1xf32> to vector<1x1x1xf32>
    %37 = vector.extract %36[0, 0, 0] : f32 from vector<1x1x1xf32>
    %c0_12 = arith.constant 0 : index
    %c0_13 = arith.constant 0 : index
    %38 = memref.load %arg3[%c0_12, %c0_13] : memref<1x1xf32, #tpu.memory_space<smem>>
    memref.store %37, %arg3[%c0_12, %c0_13] : memref<1x1xf32, #tpu.memory_space<smem>>
    return
  }
  func.func @transform_0(%arg0: i32) -> (i32, i32) {
    %c0_i32 = arith.constant 0 : i32
    %c0_i32_0 = arith.constant 0 : i32
    return %arg0, %c0_i32 : i32, i32
  }
  func.func @transform_1(%arg0: i32) -> (i32, i32) {
    %c0_i32 = arith.constant 0 : i32
    %c0_i32_0 = arith.constant 0 : i32
    return %arg0, %c0_i32 : i32, i32
  }
  func.func @transform_2(%arg0: i32) -> (i32, i32) {
    %c0_i32 = arith.constant 0 : i32
    %c0_i32_0 = arith.constant 0 : i32
    return %arg0, %c0_i32 : i32, i32
  }
}

</mosaic_0001>

<llo_original>
// kernel: tpu_custom_call.1
$region0: #{tpu_custom_call.1}
  #allocation0 [shape = 'u32[]', space=smem, size = 0x4, offset = 0x4, fixed_abs, tag = 'smem constant byte address 0x4 - core index']
  #allocation1 [shape = 'u32[144,128]{1,0:T(1,128)}', space=vmem, size = 0x12000, scoped, tag = 'internal scratch']
  %s0 = inlined_call_operand.vmem [shape: f32[16,128], index: 0, kind: input, shape index: {}]
  %s1 = inlined_call_operand.vmem [shape: s32[16,1], index: 1, kind: input, shape index: {}]
  %s2 = inlined_call_operand.hbm [shape: f32[1,1], index: 2, kind: output, shape index: {}]
  %s3 = sld [smem:[#allocation0]]
  $region18: #{tpu_custom_call.1} parent=0
    _
  %s5 = ssub.s32 1, %s3
  %s6 = scalar_select 0, %s5, %s3
  $region1: #{tpu_custom_call.1} parent=0
    #allocation2 [shape = 'u8[512]{0}', space=smem, size = 0x200, scoped, tag = 'output window, operand 0, single buffered']
    #allocation3 [shape = 's32[1]{0}', space=sflag, size = 0x4, scoped, tag = 'scoped memory for tpu_custom_call.1']
    %7 = vsyncpa [#allocation3], 0
    // Predicated region
    $region2: #{tpu_custom_call.1} parent=1 // pred_check
      _
    $region3: #{tpu_custom_call.1} parent=1 // pred_check_branch
      %9 = sbr.rel (0) target = $region5
    $region4: #{tpu_custom_call.1} parent=1 // pred_region
      _
    $region5: #{tpu_custom_call.1} parent=1 // pred_fallthru
      _
    // Predicated region
    $region6: #{tpu_custom_call.1} parent=1 // pred_check
      _
    $region7: #{tpu_custom_call.1} parent=1 // pred_check_branch
      %11 = sbr.rel (0) target = $region9
    $region8: #{tpu_custom_call.1} parent=1 // pred_region
      _
    $region9: #{tpu_custom_call.1} parent=1 // pred_fallthru
      _
    %v12 = vld [vmem:[%s0] sm:$0xff]
    %v13 = vld [vmem:[%s0 + $0x8] sm:$0xff]
    %v14 = vld [vmem:[%s1] sm:$0xff]
    %v15 = vld [vmem:[%s1 + $0x8] sm:$0xff]
    %16 = vmax.xlane.f32.xlu0 %v12
    %v17 = vpop.xlane.xlu0 %16
    %18 = vmax.xlane.f32.xlu0 %v13
    %v19 = vpop.xlane.xlu0 %18
    %v20 = vsub.f32 %v12, %v17
    %v21 = vsub.f32 %v13, %v19
    %v22 = vmul.f32 %v20, 1.442695
    %v23 = vpow.pop %v22
    %v24 = vmul.f32 %v21, 1.442695
    %v25 = vpow.pop %v24
    %26 = vadd.xlane.f32.xlu0 %v23
    %v27 = vpop.xlane.xlu0 %26
    %28 = vadd.xlane.f32.xlu0 %v25
    %v29 = vpop.xlane.xlu0 %28
    %v30 = vlog2.pop %v27
    %v31 = vmul.f32 %v30, 0.6931472
    %v32 = vlog2.pop %v29
    %v33 = vmul.f32 %v32, 0.6931472
    %v34 = vlaneseq
    %v35 = vand.u32 %v34, 127
    %36 = vset.pattern.permute.xlu0 0
    %37 = vperm.xlu0 %36, %v14
    %v38 = vpop.permute.xlu0 %37
    %39 = vset.pattern.permute.xlu0 0
    %40 = vperm.xlu0 %39, %v15
    %v41 = vpop.permute.xlu0 %40
    %vm42 = vcmp.eq.s32.totalorder %v35, %v38
    %vm43 = vcmp.eq.s32.totalorder %v35, %v41
    %v44 = vsel %vm42, %v12, 0.0
    %v45 = vsel %vm43, %v13, 0.0
    %46 = vadd.xlane.f32.xlu0 %v44
    %v47 = vpop.xlane.xlu0 %46
    %48 = vadd.xlane.f32.xlu0 %v45
    %v49 = vpop.xlane.xlu0 %48
    %50 = vadd.xlane.f32.xlu0 %v12
    %v51 = vpop.xlane.xlu0 %50
    %52 = vadd.xlane.f32.xlu0 %v13
    %v53 = vpop.xlane.xlu0 %52
    %v54 = vadd.f32 %v17, %v31
    %v55 = vadd.f32 %v19, %v33
    %v56 = vmul.f32 %v47, 0.9
    %v57 = vmul.f32 %v49, 0.9
    %v58 = vsub.f32 %v54, %v56
    %v59 = vsub.f32 %v55, %v57
    %v60 = vmul.f32 %v51, 0.00078125
    %v61 = vmul.f32 %v53, 0.00078125
    %v62 = vsub.f32 %v58, %v60
    %v63 = vsub.f32 %v59, %v61
    %s64 = smul.u32 0, 16
    %v65 = vlaneseq
    %v66 = vshrl.u32 %v65, 7
    %v67 = vadd.s32 %v66, 8
    %v68 = vstv %s64
    %v69 = vadd.s32 %v68, %v66
    %v70 = vadd.s32 %v68, %v67
    %vm71 = vcmp.lt.s32.totalorder %v69, 16
    %vm72 = vcmp.lt.s32.totalorder %v70, 16
    %v73 = vsel %vm71, %v62, 0.0
    %v74 = vsel %vm72, %v63, 0.0
    %vm75 = vcmask 7168
    %v76 = vsel %vm75, %v73, 0.0
    %v77 = vsel %vm75, %v74, 0.0
    %v78 = vadd.f32 %v76, %v77
    %79 = vadd.xlane.f32.xlu0 %v78
    %v80 = vpop.xlane.xlu0 %79
    %v81 = vrot.slane %v80, 4
    %v82 = vadd.f32 %v80, %v81
    %v83 = vrot.slane %v82, 2
    %v84 = vadd.f32 %v82, %v83
    %v85 = vrot.slane %v84, 1
    %v86 = vadd.f32 %v84, %v85
    %s87 = vtos %v86
    %s88 = scalar_lea.smem [#allocation2], 0
    %89 = sst [smem:[%s88]] %s87
    // Predicated region
    $region10: #{tpu_custom_call.1} parent=1 // pred_check
      _
    $region11: #{tpu_custom_call.1} parent=1 // pred_check_branch
      %91 = sbr.rel (0) target = $region13
    $region12: #{tpu_custom_call.1} parent=1 // pred_region
      %s93 = ssub.s32 16, 16
      %94 = vsyncadd [#allocation3], %s93
      %97 = dma.smem_to_hbm [#allocation2], 16, %s2, [#allocation3]
    $region13: #{tpu_custom_call.1} parent=1 // pred_fallthru
      _
    // Predicated region
    $region14: #{tpu_custom_call.1} parent=1 // pred_check
      _
    $region15: #{tpu_custom_call.1} parent=1 // pred_check_branch
      %99 = sbr.rel (0) target = $region17
    $region16: #{tpu_custom_call.1} parent=1 // pred_region
      %100 = dma.done [#allocation3], 16
    $region17: #{tpu_custom_call.1} parent=1 // pred_fallthru
      _
    %101 = sfence
    %102 = vsyncpa [#allocation3], 1

</llo_original>
